<compile_context>
chip_gen: v5e
topology: v5e:2x2
jax: 0.10.0
libtpu: 0.0.40
codegen_flags: <defaults>
</compile_context>

<pallas_src>
import jax
import jax.numpy as jnp
from jax.experimental import pallas as pl
from jax.experimental.pallas import tpu as pltpu


def _round_up(x, m):
    return (x + m - 1) // m * m


def _matmul_bias_kernel(w_ref, a_ref, b_ref, o_ref):
    """One grid step: [Cout_pad, K_pad] @ [K_pad, TM] + bias -> [Cout_pad, TM].

    Single MXU matmul with f32 accumulation.  M (spatial) is the lane dim and
    is a multiple of 128, so stores are unmasked full-width vst; Cout only
    occupies sublanes (no lane padding waste).  No in-kernel reshapes/gathers.
    """
    acc = jnp.dot(w_ref[...], a_ref[...], preferred_element_type=jnp.float32)
    o_ref[...] = (acc + b_ref[...]).astype(o_ref.dtype)


def conv2d_pallas(x_nchw, weight_oihw, bias, *, stride=1, padding=0,
                  compute_dtype=jnp.bfloat16, block_m=None):
    """Equivalent of nn.Conv2d(in, out, k, stride, padding)(x) for NCHW input.

    compute_dtype=jnp.bfloat16 (default) uses the bf16 MXU path with f32
    accumulation; pass jnp.float32 for exact numerics.
    """
    N, Cin, H, W = x_nchw.shape
    Cout, Cin_w, KH, KW = weight_oihw.shape
    assert Cin == Cin_w
    OH = (H + 2 * padding - KH) // stride + 1
    OW = (W + 2 * padding - KW) // stride + 1

    out_dtype = jnp.dtype(x_nchw.dtype)
    compute_dtype = jnp.dtype(compute_dtype or out_dtype)
    # Sublane granule of the compute dtype (8 rows of 32-bit; packed dtypes
    # stack 2x/4x per sublane).
    granule = 8 * max(1, 4 // compute_dtype.itemsize)

    # ---- XLA-side glue: spatial pad in NCHW, im2col with K along rows. ----
    x_pad = jnp.pad(x_nchw,
                    ((0, 0), (0, 0), (padding, padding), (padding, padding)))
    span_h = (OH - 1) * stride + 1
    span_w = (OW - 1) * stride + 1
    cols = [x_pad[:, :, kh:kh + span_h:stride, kw:kw + span_w:stride]
            for kh in range(KH) for kw in range(KW)]
    # patches_t[n, cin*KH*KW + kh*KW + kw, oh*OW + ow]
    patches_t = jnp.stack(cols, axis=2).reshape(N, Cin * KH * KW, OH * OW)

    K = Cin * KH * KW
    OHW = OH * OW
    k_pad = _round_up(K, granule)         # zero-pad contraction to sublane granule
    cout_pad = _round_up(Cout, granule)   # sublane pad only (NOT 128 lanes)

    # OIHW flattens as (cin, kh, kw) -> matches the patch row ordering above.
    w_t = weight_oihw.reshape(Cout, K)
    w_t = jnp.pad(w_t, ((0, cout_pad - Cout), (0, k_pad - K))).astype(compute_dtype)
    # Bias stays f32 and is added after the f32 accumulation (precision-safe
    # for the bf16 compute path).
    b_col = jnp.pad(bias.astype(jnp.float32).reshape(Cout, 1),
                    ((0, cout_pad - Cout), (0, 0)))

    # ---- Tile size along M (lanes), derived from a VMEM budget. ----
    if block_m is None:
        # Double-buffered per-column bytes of the pipelined operands
        # (patches tile in + out tile back); weight/bias are grid-invariant.
        # 8 MiB keeps us far under v5e's 16 MiB scoped-VMEM default and v7x's
        # 64 MiB/TC physical VMEM, so no vmem_limit_bytes override is needed.
        budget = 8 << 20
        per_col = 2 * (k_pad * compute_dtype.itemsize
                       + cout_pad * out_dtype.itemsize)
        block_m = max(128, min(2048, (budget // per_col) // 128 * 128))
    tm = _round_up(min(block_m, _round_up(OHW, 128)), 128)
    ohw_pad = _round_up(OHW, tm)

    patches_t = jnp.pad(
        patches_t, ((0, 0), (0, k_pad - K), (0, ohw_pad - OHW))
    ).astype(compute_dtype)

    out_t = pl.pallas_call(
        _matmul_bias_kernel,
        out_shape=jax.ShapeDtypeStruct((N, cout_pad, ohw_pad), out_dtype),
        grid_spec=pltpu.PrefetchScalarGridSpec(
            num_scalar_prefetch=0,
            # (batch, spatial tiles): both parallel -> shards across v7x's 2 TCs.
            grid=(N, ohw_pad // tm),
            in_specs=[
                # Weight / bias: constant block index -> DMA hoisted, no re-fetch.
                pl.BlockSpec((cout_pad, k_pad), lambda n, t: (0, 0)),
                pl.BlockSpec((None, k_pad, tm), lambda n, t: (n, 0, t)),
                pl.BlockSpec((cout_pad, 1), lambda n, t: (0, 0)),
            ],
            out_specs=pl.BlockSpec((None, cout_pad, tm), lambda n, t: (n, 0, t)),
        ),
        compiler_params=pltpu.CompilerParams(
            dimension_semantics=("parallel", "parallel"),
        ),
    )(w_t, patches_t, b_col)

    # Drop sublane/lane padding; [N, Cout, OH*OW] is already NCHW row order,
    # so no post-kernel transpose pass.
    return out_t[:, :Cout, :OHW].reshape(N, Cout, OH, OW)


if __name__ == "__main__":
    # Module config: Conv2D(in_channels=4, out_channels=8, kernel_size=3,
    #                       stride=1, padding=1), small CIFAR-like shapes.
    N, Cin, H, W = 2, 4, 16, 16
    Cout, Ksz, stride, padding = 8, 3, 1, 1

    key = jax.random.PRNGKey(0)
    kx, kwt, kb = jax.random.split(key, 3)
    x = jax.random.normal(kx, (N, Cin, H, W), dtype=jnp.float32)

    # Deterministic nn.Conv2d-style init: U(-1/sqrt(fan_in), 1/sqrt(fan_in)).
    fan_in = Cin * Ksz * Ksz
    bound = 1.0 / (fan_in ** 0.5)
    weight = jax.random.uniform(kwt, (Cout, Cin, Ksz, Ksz), jnp.float32, -bound, bound)
    bias = jax.random.uniform(kb, (Cout,), jnp.float32, -bound, bound)

    def ref_conv(xv, wv, bv, s, p):
        return jax.lax.conv_general_dilated(
            xv, wv,
            window_strides=(s, s),
            padding=[(p, p), (p, p)],
            dimension_numbers=("NCHW", "OIHW", "NCHW"),
        ) + bv[None, :, None, None]

    ref = ref_conv(x, weight, bias, stride, padding)

    # Exact path (f32 compute) — the configured stride=1 / padding=1 conv.
    out_f32 = jax.block_until_ready(
        conv2d_pallas(x, weight, bias, stride=stride, padding=padding,
                      compute_dtype=jnp.float32))
    assert out_f32.shape == ref.shape == (N, Cout, H, W)
    assert jnp.allclose(out_f32, ref, atol=1e-4, rtol=1e-4)

    # Default path: bf16 MXU compute (v6e/v7x-native), f32 accumulation;
    # loose tolerance because inputs are quantized to bf16.
    out_def = jax.block_until_ready(
        conv2d_pallas(x, weight, bias, stride=stride, padding=padding))
    assert out_def.shape == ref.shape
    assert jnp.allclose(out_def, ref, atol=1e-1, rtol=1e-1)

    # stride=2 / padding=0 variant (exercises strided im2col + lane padding).
    out2 = jax.block_until_ready(
        conv2d_pallas(x, weight, bias, stride=2, padding=0,
                      compute_dtype=jnp.float32))
    ref2 = ref_conv(x, weight, bias, 2, 0)
    assert out2.shape == ref2.shape
    assert jnp.allclose(out2, ref2, atol=1e-4, rtol=1e-4)

    print("KERNEL_OK")
</pallas_src>

<mosaic_0001>
module attributes {stable_mosaic.version = 11 : i64} {
  func.func @_matmul_bias_kernel(%arg0: i32, %arg1: i32, %arg2: memref<8x40xf32, #tpu.memory_space<vmem>>, %arg3: memref<1x40x256xf32, #tpu.memory_space<vmem>>, %arg4: memref<8x1xf32, #tpu.memory_space<vmem>>, %arg5: memref<1x8x256xf32, #tpu.memory_space<vmem>>) attributes {dimension_semantics = [#tpu.dimension_semantics<parallel>, #tpu.dimension_semantics<parallel>], iteration_bounds = array<i64: 2, 1>, scalar_prefetch = 0 : i64, scratch_operands = 0 : i64, tpu.core_type = #tpu.core_type<tc>, window_params = [{pipeline_mode = #tpu.pipeline_mode<synchronous>, transform_indices = @transform_0, window_bounds = array<i64: 8, 40>}, {transform_indices = @transform_1, window_bounds = array<i64: 1, 40, 256>}, {pipeline_mode = #tpu.pipeline_mode<synchronous>, transform_indices = @transform_2, window_bounds = array<i64: 8, 1>}, {transform_indices = @transform_3, window_bounds = array<i64: 1, 8, 256>}]} {
    %c0 = arith.constant 0 : index
    %c0_0 = arith.constant 0 : index
    %0 = vector.load %arg2[%c0, %c0_0] : memref<8x40xf32, #tpu.memory_space<vmem>>, vector<8x40xf32>
    %c0_1 = arith.constant 0 : index
    %c0_2 = arith.constant 0 : index
    %c0_3 = arith.constant 0 : index
    %1 = vector.load %arg3[%c0_1, %c0_2, %c0_3] : memref<1x40x256xf32, #tpu.memory_space<vmem>>, vector<1x40x256xf32>
    %2 = vector.shape_cast %1 : vector<1x40x256xf32> to vector<40x256xf32>
    %cst = arith.constant dense<0.000000e+00> : vector<8x256xf32>
    %3 = tpu.matmul %0, %2, %cst {dimension_numbers = #tpu.dot_dimension_numbers<[1], [0], [0], [1], [0, 0, 1, 1], [], []>} : vector<8x40xf32>, vector<40x256xf32>, vector<8x256xf32> -> vector<8x256xf32>
    %c0_4 = arith.constant 0 : index
    %c0_5 = arith.constant 0 : index
    %4 = vector.load %arg4[%c0_4, %c0_5] : memref<8x1xf32, #tpu.memory_space<vmem>>, vector<8x1xf32>
    %5 = vector.broadcast %4 : vector<8x1xf32> to vector<8x256xf32>
    %6 = arith.addf %3, %5 : vector<8x256xf32>
    %c0_6 = arith.constant 0 : index
    %c0_7 = arith.constant 0 : index
    %c0_8 = arith.constant 0 : index
    %7 = vector.load %arg5[%c0_6, %c0_7, %c0_8] : memref<1x8x256xf32, #tpu.memory_space<vmem>>, vector<1x8x256xf32>
    %8 = vector.shape_cast %7 : vector<1x8x256xf32> to vector<8x256xf32>
    %9 = vector.shape_cast %6 : vector<8x256xf32> to vector<1x8x256xf32>
    tpu.vector_store %arg5[%c0_6, %c0_7, %c0_8], %9 {strides = array<i32>} : memref<1x8x256xf32, #tpu.memory_space<vmem>>, vector<1x8x256xf32>,
    return
  }
  func.func @transform_0(%arg0: i32, %arg1: i32) -> (i32, i32) {
    %c0_i32 = arith.constant 0 : i32
    %c0_i32_0 = arith.constant 0 : i32
    %c0_i32_1 = arith.constant 0 : i32
    return %c0_i32, %c0_i32_0 : i32, i32
  }
  func.func @transform_1(%arg0: i32, %arg1: i32) -> (i32, i32, i32) {
    %c0_i32 = arith.constant 0 : i32
    %c0_i32_0 = arith.constant 0 : i32
    return %arg0, %c0_i32, %arg1 : i32, i32, i32
  }
  func.func @transform_2(%arg0: i32, %arg1: i32) -> (i32, i32) {
    %c0_i32 = arith.constant 0 : i32
    %c0_i32_0 = arith.constant 0 : i32
    %c0_i32_1 = arith.constant 0 : i32
    return %c0_i32, %c0_i32_0 : i32, i32
  }
  func.func @transform_3(%arg0: i32, %arg1: i32) -> (i32, i32, i32) {
    %c0_i32 = arith.constant 0 : i32
    %c0_i32_0 = arith.constant 0 : i32
    return %arg0, %c0_i32, %arg1 : i32, i32, i32
  }
}

</mosaic_0001>

<llo_original>
// kernel: tpu_custom_call.1
$region0: #{tpu_custom_call.1}
  #allocation0 [shape = 'u32[]', space=smem, size = 0x4, offset = 0x4, fixed_abs, tag = 'smem constant byte address 0x4 - core index']
  #allocation1 [shape = 'u32[72,128]{1,0:T(1,128)}', space=vmem, size = 0x9000, scoped, tag = 'internal scratch']
  %s0 = inlined_call_operand.vmem [shape: f32[8,40], index: 0, kind: input, shape index: {}]
  %s1 = inlined_call_operand.hbm [shape: f32[2,40,256], index: 1, kind: input, shape index: {}]
  %s2 = inlined_call_operand.vmem [shape: f32[8,1], index: 2, kind: input, shape index: {}]
  %s3 = inlined_call_operand.hbm [shape: f32[2,8,256], index: 3, kind: output, shape index: {}]
  %s4 = sld [smem:[#allocation0]]
  $region49: #{tpu_custom_call.1} parent=0
    _
  %s6 = ssub.s32 1, %s4
  %s7 = scalar_select 0, %s6, %s4
  $region1: #{tpu_custom_call.1} parent=0
    #allocation2 [shape = 'u8[81920]{0}', space=vmem, size = 0x14000, scoped, tag = 'input window, operand 1']
    #allocation3 [shape = 's32[2]{0}', space=sflag, size = 0x8, scoped, tag = 'scoped memory for tpu_custom_call.1']
    #allocation4 [shape = 's32[2]{0}', space=sflag, size = 0x8, scoped, tag = 'scoped memory for tpu_custom_call.1']
    #allocation5 [shape = 'u8[16384]{0}', space=vmem, size = 0x4000, scoped, tag = 'output window, operand 0']
    %8 = vsyncpa [#allocation3], 0
    %s9 = scalar_lea.sflag [#allocation3], 1
    %10 = vsyncpa %s9, 0
    %11 = vsyncpa [#allocation4], 0
    %s12 = scalar_lea.sflag [#allocation4], 1
    %13 = vsyncpa %s12, 0
    loop: start=0, step=1, limit=4
    $region2: #{tpu_custom_call.1} parent=1 // loop_pre_header
      _
    $region3: #{tpu_custom_call.1} parent=1 // loop_header
      %s15 = sphi 0, %s19
      %p16 = scmp.ge.s32.totalorder %s15, 4
      %s22 = sphi 0, %s34
      %s23 = sphi 0, %s30
      %s24 = sphi 0, %s22
      %s25 = sphi 0, %s23
      %s26 = sphi 0, %s24
      %s27 = sphi 0, %s25
      %s35 = sphi 0, %s35
      %s37 = sphi 0, %s35
      %s38 = sphi 0, %s37
      %s52 = sphi 0, %s38
      %s60 = sphi 0, %s62
      %s63 = sphi 0, %s60
      %s64 = sphi 0, %s63
      %s80 = sphi 0, %s64
      %s84 = sphi 0, %s84
      %s86 = sphi 0, %s84
      %s87 = sphi 0, %s86
      %s101 = sphi 0, %s87
      %s109 = sphi 0, %s111
      %s112 = sphi 0, %s109
      %s113 = sphi 0, %s112
      %s129 = sphi 0, %s113
    $region4: #{tpu_custom_call.1} parent=1 // loop_header_branch
      %18 = sbr.rel (%p16) target = $region8
    $region5: #{tpu_custom_call.1} parent=1 // loop_body
      %s20 = ssub.s32 %s15, 1
      %s21 = ssub.s32 %s15, 2
      %s28 = sadd.s32 1, %s23
      %p29 = scmp.ge.s32.totalorder %s28, 1
      %s30 = scalar_select %p29, 0, %s28
      %s31 = sadd.s32 1, %s22
      %s32 = scalar_select %p29, %s31, %s22
      %p33 = scmp.ge.s32.totalorder %s32, 2
      %s34 = scalar_select %p33, 0, %s32
      %s36 = sadd.s32 %s35, 1
      %p39 = scmp.eq.s32.totalorder %s15, 1
      %p40 = scmp.ne.s32.totalorder %s35, %s37
      %p41 = scmp.eq.s32.totalorder %s15, 0
      %p42 = por %p40, %p41
      %p43 = scmp.ne.s32.totalorder %s35, %s37
      %p44 = scmp.eq.s32.totalorder %s20, 1
      %p45 = por %p43, %p44
      %p46 = scmp.ne.s32.totalorder %s37, %s38
      %p47 = scmp.eq.s32.totalorder %s20, 0
      %p48 = por %p46, %p47
      %p49 = scmp.ne.s32.totalorder %s37, %s38
      %p50 = scmp.eq.s32.totalorder %s21, 1
      %p51 = por %p49, %p50
      %p53 = scmp.ne.s32.totalorder %s38, %s52
      %p54 = scmp.eq.s32.totalorder %s21, 0
      %p55 = por %p53, %p54
      %s56 = ssub.s32 %s22, %s34
      %s57 = ssub.s32 %s23, %s30
      %s58 = sor.u32 %s56, %s57
      %p59 = scmp.eq.s32.totalorder %s58, 0
      %s61 = sadd.s32 %s60, 1
      %s62 = scalar_select %p59, %s60, %s61
      %p65 = pneg %p59
      %p66 = scmp.eq.s32.totalorder %s15, 1
      %p67 = por %p65, %p66
      %p68 = scmp.ne.s32.totalorder %s60, %s63
      %p69 = scmp.eq.s32.totalorder %s15, 0
      %p70 = por %p68, %p69
      %p71 = scmp.ne.s32.totalorder %s60, %s63
      %p72 = scmp.eq.s32.totalorder %s20, 1
      %p73 = por %p71, %p72
      %p74 = scmp.ne.s32.totalorder %s63, %s64
      %p75 = scmp.eq.s32.totalorder %s20, 0
      %p76 = por %p74, %p75
      %p77 = scmp.ne.s32.totalorder %s63, %s64
      %p78 = scmp.eq.s32.totalorder %s21, 1
      %p79 = por %p77, %p78
      %p81 = scmp.ne.s32.totalorder %s64, %s80
      %p82 = scmp.eq.s32.totalorder %s21, 0
      %p83 = por %p81, %p82
      %s85 = sadd.s32 %s84, 1
      %p88 = scmp.eq.s32.totalorder %s15, 1
      %p89 = scmp.ne.s32.totalorder %s84, %s86
      %p90 = scmp.eq.s32.totalorder %s15, 0
      %p91 = por %p89, %p90
      %p92 = scmp.ne.s32.totalorder %s84, %s86
      %p93 = scmp.eq.s32.totalorder %s20, 1
      %p94 = por %p92, %p93
      %p95 = scmp.ne.s32.totalorder %s86, %s87
      %p96 = scmp.eq.s32.totalorder %s20, 0
      %p97 = por %p95, %p96
      %p98 = scmp.ne.s32.totalorder %s86, %s87
      %p99 = scmp.eq.s32.totalorder %s21, 1
      %p100 = por %p98, %p99
      %p102 = scmp.ne.s32.totalorder %s87, %s101
      %p103 = scmp.eq.s32.totalorder %s21, 0
      %p104 = por %p102, %p103
      %s105 = ssub.s32 %s22, %s34
      %s106 = ssub.s32 %s23, %s30
      %s107 = sor.u32 %s105, %s106
      %p108 = scmp.eq.s32.totalorder %s107, 0
      %s110 = sadd.s32 %s109, 1
      %s111 = scalar_select %p108, %s109, %s110
      %p114 = pneg %p108
      %p115 = scmp.eq.s32.totalorder %s15, 1
      %p116 = por %p114, %p115
      %p117 = scmp.ne.s32.totalorder %s109, %s112
      %p118 = scmp.eq.s32.totalorder %s15, 0
      %p119 = por %p117, %p118
      %p120 = scmp.ne.s32.totalorder %s109, %s112
      %p121 = scmp.eq.s32.totalorder %s20, 1
      %p122 = por %p120, %p121
      %p123 = scmp.ne.s32.totalorder %s112, %s113
      %p124 = scmp.eq.s32.totalorder %s20, 0
      %p125 = por %p123, %p124
      %p126 = scmp.ne.s32.totalorder %s112, %s113
      %p127 = scmp.eq.s32.totalorder %s21, 1
      %p128 = por %p126, %p127
      %p130 = scmp.ne.s32.totalorder %s113, %s129
      %p131 = scmp.eq.s32.totalorder %s21, 0
      %p132 = por %p130, %p131
      %p133 = scmp.le.s32.totalorder 1, %s15
      %p134 = scmp.lt.s32.totalorder %s15, 3
      %p135 = pnand %p133, %p134
      %p136 = pneg %p135
      // Predicated region
      $region9: #{tpu_custom_call.1} parent=5 // pred_check
        _
      $region10: #{tpu_custom_call.1} parent=5 // pred_check_branch
        %138 = sbr.rel (%p135) target = $region12
      $region11: #{tpu_custom_call.1} parent=5 // pred_region
        %s139 = ssub.s32 %s15, 1
        // Predicated region
        $region13: #{tpu_custom_call.1} parent=11 // pred_check
          %p140 = pneg %p48
        $region14: #{tpu_custom_call.1} parent=11 // pred_check_branch
          %142 = sbr.rel (%p140) target = $region16
        $region15: #{tpu_custom_call.1} parent=11 // pred_region
          _
        $region16: #{tpu_custom_call.1} parent=11 // pred_fallthru
          _
        // Predicated region
        $region17: #{tpu_custom_call.1} parent=11 // pred_check
          %p143 = pneg %p97
        $region18: #{tpu_custom_call.1} parent=11 // pred_check_branch
          %145 = sbr.rel (%p143) target = $region20
        $region19: #{tpu_custom_call.1} parent=11 // pred_region
          _
        $region20: #{tpu_custom_call.1} parent=11 // pred_fallthru
          _
      $region12: #{tpu_custom_call.1} parent=5 // pred_fallthru
        _
      %p146 = scmp.lt.s32.totalorder %s15, 2
      // Predicated region
      $region21: #{tpu_custom_call.1} parent=5 // pred_check
        %p147 = pneg %p146
      $region22: #{tpu_custom_call.1} parent=5 // pred_check_branch
        %149 = sbr.rel (%p147) target = $region24
      $region23: #{tpu_custom_call.1} parent=5 // pred_region
        // Predicated region
        $region25: #{tpu_custom_call.1} parent=23 // pred_check
          %p150 = pneg %p70
        $region26: #{tpu_custom_call.1} parent=23 // pred_check_branch
          %152 = sbr.rel (%p150) target = $region28
        $region27: #{tpu_custom_call.1} parent=23 // pred_region
          %s153 = sand.u32 %s60, 1
          %s154 = scalar_lea.sflag [#allocation3], %s153
          %s155 = sand.u32 %s60, 1
          %s156 = smul.addr %s155, 80
          %s157 = scalar_lea.vmem [#allocation2], %s156
          %s158 = smul.u32 2, %s23
          %160 = vsyncadd %s154, 0
          %s161 = smul.addr %s22, 10
          %s162 = sadd.s32 %s158, %s161
          %s163 = smul.addr %s162, 8
          %s164 = scalar_lea.hbm %s1, %s163
          %s165 = sshll.u32 %s164, 4
          %s166 = int_to_ptr.hbm [resolvable:$true] %s165
          %s167 = sshll.u32 %s157, 4
          %s168 = int_to_ptr.vmem [resolvable:$true] %s167
          %173 = dma.hbm_to_vmem [thread:$0]  %s166, 1280, %s168, %s154, 256, 256, 16
        $region28: #{tpu_custom_call.1} parent=23 // pred_fallthru
          _
      $region24: #{tpu_custom_call.1} parent=5 // pred_fallthru
        _
      %p174 = scmp.le.s32.totalorder 1, %s15
      %p175 = scmp.lt.s32.totalorder %s15, 3
      %p176 = pnand %p174, %p175
      %p177 = pneg %p176
      // Predicated region
      $region29: #{tpu_custom_call.1} parent=5 // pred_check
        _
      $region30: #{tpu_custom_call.1} parent=5 // pred_check_branch
        %179 = sbr.rel (%p176) target = $region32
      $region31: #{tpu_custom_call.1} parent=5 // pred_region
        %s180 = ssub.s32 %s15, 1
        %s181 = sand.u32 %s63, 1
        %s182 = scalar_lea.sflag [#allocation3], %s181
        %s183 = sand.u32 %s63, 1
        %s184 = smul.addr %s183, 80
        %s185 = scalar_lea.vmem [#allocation2], %s184
        // Predicated region
        $region33: #{tpu_custom_call.1} parent=31 // pred_check
          %p186 = pneg %p76
        $region34: #{tpu_custom_call.1} parent=31 // pred_check_branch
          %188 = sbr.rel (%p186) target = $region36
        $region35: #{tpu_custom_call.1} parent=31 // pred_region
          %190 = dma.done %s182, 1280
        $region36: #{tpu_custom_call.1} parent=31 // pred_fallthru
          _
        %p191 = pneg %p48
        %p192 = pneg %p45
        %s193 = sand.u32 %s63, 1
        %s194 = scalar_lea.sflag [#allocation3], %s193
        %s195 = sand.u32 %s63, 1
        %s196 = smul.addr %s195, 80
        %s197 = scalar_lea.vmem [#allocation2], %s196
        %p198 = pneg %p76
        %p199 = pneg %p73
        %p200 = pneg %p97
        %p201 = pneg %p94
        %p202 = pneg %p125
        %p203 = pneg %p122
        %s204 = sand.u32 %s112, 1
        %s205 = scalar_lea.sflag [#allocation4], %s204
        %s206 = sand.u32 %s112, 1
        %s207 = smul.addr %s206, 16
        %s208 = scalar_lea.vmem [#allocation5], %s207
        %s209 = smul.u32 2, %s25
        %s210 = smul.u32 2, %s25
        %v211 = vld [vmem:[%s0] sm:$0xff]
        %v212 = vld [vmem:[%s185] sm:$0xff]
        %v213 = vld [vmem:[%s185 + $0x8] sm:$0xff]
        %v214 = vld [vmem:[%s185 + $0x10] sm:$0xff]
        %v215 = vld [vmem:[%s185 + $0x18] sm:$0xff]
        %v216 = vld [vmem:[%s185 + $0x20] sm:$0xff]
        %v217 = vld [vmem:[%s185 + $0x28] sm:$0xff]
        %v218 = vld [vmem:[%s185 + $0x30] sm:$0xff]
        %v219 = vld [vmem:[%s185 + $0x38] sm:$0xff]
        %v220 = vld [vmem:[%s185 + $0x40] sm:$0xff]
        %v221 = vld [vmem:[%s185 + $0x48] sm:$0xff]
        %v222 = vld [vmem:[%s2] sm:$0xff]
        %224 = vset.pattern.permute.xlu0 0
        %225 = vperm.xlu0 %224, %v222
        %v226 = vpop.permute.xlu0 %225
        %vm228 = vcmask 326656
        %v230 = vsel %vm228, %v211, 0
        %232 = vmatpush.msra.mxu0 0.0
        %233 = vmatpush.msra.mxu0 0.0
        %234 = vmatpush.msra.mxu0 0.0
        %235 = vmatpush.msra.mxu0 0.0
        %236 = vmatpush.msra.mxu0 0.0
        %237 = vmatpush.msra.mxu0 0.0
        %238 = vmatpush.msra.mxu0 0.0
        %239 = vmatpush.msra.mxu0 0.0
        %240 = vmatpush.msra.mxu0 0.0
        %241 = vmatpush.msra.mxu0 0.0
        %242 = vmatpush.msra.mxu0 0.0
        %243 = vmatpush.msra.mxu0 %v220
        %244 = vmatpush.msra.mxu0 %v218
        %245 = vmatpush.msra.mxu0 %v216
        %246 = vmatpush.msra.mxu0 %v214
        %247 = vmatpush.msra.mxu0 %v212
        %248 = vmatmul.f32.gmra.mxu0 %v230
        %v249 = vpop.f32.mrf.mxu0
        %v250 = vadd.f32 %v226, %v249
        %251 = vdwg.mxu0
        %252 = vmatpush.msra.mxu0 0.0
        %253 = vmatpush.msra.mxu0 0.0
        %254 = vmatpush.msra.mxu0 0.0
        %255 = vmatpush.msra.mxu0 0.0
        %256 = vmatpush.msra.mxu0 0.0
        %257 = vmatpush.msra.mxu0 0.0
        %258 = vmatpush.msra.mxu0 0.0
        %259 = vmatpush.msra.mxu0 0.0
        %260 = vmatpush.msra.mxu0 0.0
        %261 = vmatpush.msra.mxu0 0.0
        %262 = vmatpush.msra.mxu0 0.0
        %263 = vmatpush.msra.mxu0 %v221
        %264 = vmatpush.msra.mxu0 %v219
        %265 = vmatpush.msra.mxu0 %v217
        %266 = vmatpush.msra.mxu0 %v215
        %267 = vmatpush.msra.mxu0 %v213
        %268 = vmatmul.f32.gmra.mxu0 %v230
        %v269 = vpop.f32.mrf.mxu0
        %v270 = vadd.f32 %v226, %v269
        %271 = vdwg.mxu0
        %272 = vst [vmem:[%s208] sm:$0xff] %v250
        %273 = vst [vmem:[%s208 + $0x8] sm:$0xff] %v270
        %s274 = sand.u32 %s112, 1
        %s275 = scalar_lea.sflag [#allocation4], %s274
        %s276 = sand.u32 %s112, 1
        %s277 = smul.addr %s276, 16
        %s278 = scalar_lea.vmem [#allocation5], %s277
        // Predicated region
        $region37: #{tpu_custom_call.1} parent=31 // pred_check
          %p279 = pneg %p122
        $region38: #{tpu_custom_call.1} parent=31 // pred_check_branch
          %281 = sbr.rel (%p279) target = $region40
        $region39: #{tpu_custom_call.1} parent=31 // pred_region
          %s282 = smul.u32 2, %s25
          %284 = vsyncadd %s275, 0
          %s285 = smul.addr %s24, 2
          %s286 = sadd.s32 %s282, %s285
          %s287 = smul.addr %s286, 8
          %s288 = scalar_lea.hbm %s3, %s287
          %s290 = sshll.u32 %s278, 4
          %s291 = int_to_ptr.vmem [resolvable:$true] %s290
          %s292 = sshll.u32 %s288, 4
          %s293 = int_to_ptr.hbm [resolvable:$true] %s292
          %295 = dma.vmem_to_hbm [thread:$0]  %s291, 256, %s293, %s275
        $region40: #{tpu_custom_call.1} parent=31 // pred_fallthru
          _
      $region32: #{tpu_custom_call.1} parent=5 // pred_fallthru
        _
      %p296 = scmp.le.s32.totalorder 2, %s15
      // Predicated region
      $region41: #{tpu_custom_call.1} parent=5 // pred_check
        %p297 = pneg %p296
      $region42: #{tpu_custom_call.1} parent=5 // pred_check_branch
        %299 = sbr.rel (%p297) target = $region44
      $region43: #{tpu_custom_call.1} parent=5 // pred_region
        %s300 = ssub.s32 %s15, 2
        // Predicated region
        $region45: #{tpu_custom_call.1} parent=43 // pred_check
          %p301 = pneg %p128
        $region46: #{tpu_custom_call.1} parent=43 // pred_check_branch
          %303 = sbr.rel (%p301) target = $region48
        $region47: #{tpu_custom_call.1} parent=43 // pred_region
          %s304 = sand.u32 %s113, 1
          %s305 = scalar_lea.sflag [#allocation4], %s304
          %s306 = sand.u32 %s113, 1
          %s307 = smul.addr %s306, 16
          %s308 = scalar_lea.vmem [#allocation5], %s307
          %310 = dma.done %s305, 256
        $region48: #{tpu_custom_call.1} parent=43 // pred_fallthru
          _
      $region44: #{tpu_custom_call.1} parent=5 // pred_fallthru
        _
    $region6: #{tpu_custom_call.1} parent=1 // loop_footer
      %s19 = sadd.s32 1, %s15
    $region7: #{tpu_custom_call.1} parent=1 // loop_footer_branch
      %14 = sbr.rel target = $region3
    $region8: #{tpu_custom_call.1} parent=1 // loop_exit
      _
    %311 = vsyncpa [#allocation3], 1
    %s312 = scalar_lea.sflag [#allocation3], 1
    %313 = vsyncpa %s312, 1
    %314 = vsyncpa [#allocation4], 1
    %s315 = scalar_lea.sflag [#allocation4], 1
    %316 = vsyncpa %s315, 1

</llo_original>
